<compile_context>
chip_gen: v7x
topology: tpu7x:2x2x1
jax: 0.10.0
libtpu: 0.0.40
codegen_flags: <defaults>
</compile_context>

<pallas_src>
import jax
import jax.numpy as jnp
from jax.experimental import pallas as pl
from jax.experimental.pallas import tpu as pltpu

BETA = 2.3
GAMMA = 1.0


def odefunc_kernel(y_ref, integro_ref, out_ref):
    """SIR right-hand side in channel-major (3, lanes) layout. Refs in VMEM."""
    S = y_ref[0:1, :]                  # (1, tl)  sublane slice, full-lane rows
    I = y_ref[1:2, :]                  # (1, tl)
    # R = y_ref[2:3, :]  (unused in the dynamics, same as the PyTorch module)
    integro = integro_ref[...]         # (1, tl)

    bSI = BETA * (S * I)               # shared product, computed once
    gI = GAMMA * I

    # Full-lane-width row writes (no lane-axis concatenate / masked stores).
    out_ref[0:1, :] = integro - bSI    # dS/dt
    out_ref[1:2, :] = bSI - gI         # dI/dt
    out_ref[2:3, :] = gI - integro     # dR/dt


def odefunc_forward(t, y, integro, *, max_block_lane=2048):
    """Pallas wrapper for ODEFunc.forward. `t` is unused (kept for API parity).

    y: (B, 3) float, integro: (B, 1) float -> (B, 3) float.
    """
    del t
    assert y.ndim == 2 and y.shape[1] == 3, "y must be (B, 3)"
    assert integro.shape == (y.shape[0], 1), "integro must be (B, 1)"
    assert max_block_lane % 128 == 0 and max_block_lane >= 128

    B = y.shape[0]
    dtype = y.dtype

    # Channel-major, lane-dense layout: batch on the 128-lane axis.
    yT = y.T                            # (3, B)
    integroT = integro.T                # (1, B)

    # Lane tile: multiple of 128, as large as reasonable (amortizes grid-step
    # overhead; a (3, 2048) f32 tile is ~24 KiB, trivially within VMEM on
    # v5e/v6e (128 MiB) and v7x (64 MiB) even double-buffered.
    block_lane = min(max_block_lane, max(128, pl.next_power_of_2(B)))
    Bp = pl.cdiv(B, block_lane) * block_lane
    if Bp != B:
        pad = Bp - B
        yT = jnp.pad(yT, ((0, 0), (0, pad)))
        integroT = jnp.pad(integroT, ((0, 0), (0, pad)))

    grid = (Bp // block_lane,)

    outT = pl.pallas_call(
        odefunc_kernel,
        out_shape=jax.ShapeDtypeStruct((3, Bp), dtype),
        grid=grid,
        in_specs=[
            pl.BlockSpec((3, block_lane), lambda i: (0, i)),
            pl.BlockSpec((1, block_lane), lambda i: (0, i)),
        ],
        out_specs=pl.BlockSpec((3, block_lane), lambda i: (0, i)),
        compiler_params=pltpu.CompilerParams(
            dimension_semantics=("parallel",),   # shards grid across v7x's 2 TCs
        ),
    )(yT, integroT)

    # Strip padding and return in the original (B, 3) PyTorch layout.
    return outT[:, :B].T


def init_unused_nn_params(key):
    """Deterministic init of self.NN (Linear 2->20->20->20->1).

    These parameters exist in ODEFunc.__init__ but are NOT used in forward();
    materialized only for shape fidelity with the PyTorch module.
    """
    sizes = [(2, 20), (20, 20), (20, 20), (20, 1)]
    params = []
    for i, (fan_in, fan_out) in enumerate(sizes):
        k = jax.random.fold_in(key, i)
        w = 0.01 * jax.random.normal(k, (fan_out, fan_in), dtype=jnp.float32)
        b = jnp.zeros((fan_out,), dtype=jnp.float32)
        params.append((w, b))
    return params


def odefunc_forward_ref(t, y, integro):
    """Pure-JAX reference for correctness checking."""
    del t
    S = y[:, 0:1]
    I = y[:, 1:2]
    dSdt = -BETA * S * I + integro
    dIdt = BETA * S * I - GAMMA * I
    dRdt = GAMMA * I - integro
    return jnp.concatenate((dSdt, dIdt, dRdt), axis=1)


if __name__ == "__main__":
    key = jax.random.PRNGKey(0)
    k_y, k_int, k_nn = jax.random.split(key, 3)

    _nn_params = init_unused_nn_params(k_nn)  # unused in forward (as in PyTorch)
    t = jnp.float32(0.0)  # unused by forward, kept for signature parity

    # Small case matching the module's natural shapes (B=8, channels=3).
    B = 8
    y = jax.random.uniform(k_y, (B, 3), dtype=jnp.float32)          # (S, I, R)
    integro = jax.random.uniform(k_int, (B, 1), dtype=jnp.float32)

    out = odefunc_forward(t, y, integro)
    out = jax.block_until_ready(out)
    ref = odefunc_forward_ref(t, y, integro)
    assert out.shape == (B, 3)
    assert jnp.allclose(out, ref, atol=1e-6, rtol=1e-6)

    # Larger, non-multiple-of-128 batch: exercises padding and a multi-step
    # grid (multiple lane tiles -> can shard across v7x's two TensorCores).
    B2 = 4104
    y2 = jax.random.uniform(jax.random.fold_in(k_y, 1), (B2, 3), dtype=jnp.float32)
    integro2 = jax.random.uniform(jax.random.fold_in(k_int, 1), (B2, 1), dtype=jnp.float32)

    out2 = odefunc_forward(t, y2, integro2)
    out2 = jax.block_until_ready(out2)
    ref2 = odefunc_forward_ref(t, y2, integro2)
    assert out2.shape == (B2, 3)
    assert jnp.allclose(out2, ref2, atol=1e-6, rtol=1e-6)

    print("KERNEL_OK")
</pallas_src>

<mosaic_0001>
module attributes {stable_mosaic.version = 11 : i64} {
  func.func @odefunc_kernel(%arg0: i32, %arg1: memref<3x128xf32, #tpu.memory_space<vmem>>, %arg2: memref<1x128xf32, #tpu.memory_space<vmem>>, %arg3: memref<3x128xf32, #tpu.memory_space<vmem>>) attributes {dimension_semantics = [#tpu.dimension_semantics<parallel>], iteration_bounds = array<i64: 1>, scalar_prefetch = 0 : i64, scratch_operands = 0 : i64, tpu.core_type = #tpu.core_type<tc>, window_params = [{transform_indices = @transform_0, window_bounds = array<i64: 3, 128>}, {transform_indices = @transform_1, window_bounds = array<i64: 1, 128>}, {transform_indices = @transform_2, window_bounds = array<i64: 3, 128>}]} {
    %c0 = arith.constant 0 : index
    %c0_0 = arith.constant 0 : index
    %0 = vector.load %arg1[%c0, %c0_0] : memref<3x128xf32, #tpu.memory_space<vmem>>, vector<1x128xf32>
    %c1 = arith.constant 1 : index
    %c0_1 = arith.constant 0 : index
    %1 = vector.load %arg1[%c1, %c0_1] : memref<3x128xf32, #tpu.memory_space<vmem>>, vector<1x128xf32>
    %c0_2 = arith.constant 0 : index
    %c0_3 = arith.constant 0 : index
    %2 = vector.load %arg2[%c0_2, %c0_3] : memref<1x128xf32, #tpu.memory_space<vmem>>, vector<1x128xf32>
    %3 = arith.mulf %0, %1 : vector<1x128xf32>
    %cst = arith.constant 2.300000e+00 : f32
    %4 = vector.broadcast %cst : f32 to vector<1x128xf32>
    %5 = arith.mulf %4, %3 : vector<1x128xf32>
    %cst_4 = arith.constant 1.000000e+00 : f32
    %6 = vector.broadcast %cst_4 : f32 to vector<1x128xf32>
    %7 = arith.mulf %6, %1 : vector<1x128xf32>
    %8 = arith.subf %2, %5 : vector<1x128xf32>
    %c0_5 = arith.constant 0 : index
    %c0_6 = arith.constant 0 : index
    %9 = vector.load %arg3[%c0_5, %c0_6] : memref<3x128xf32, #tpu.memory_space<vmem>>, vector<1x128xf32>
    tpu.vector_store %arg3[%c0_5, %c0_6], %8 {strides = array<i32>} : memref<3x128xf32, #tpu.memory_space<vmem>>, vector<1x128xf32>,
    %10 = arith.subf %5, %7 : vector<1x128xf32>
    %c1_7 = arith.constant 1 : index
    %c0_8 = arith.constant 0 : index
    %11 = vector.load %arg3[%c1_7, %c0_8] : memref<3x128xf32, #tpu.memory_space<vmem>>, vector<1x128xf32>
    tpu.vector_store %arg3[%c1_7, %c0_8], %10 {strides = array<i32>} : memref<3x128xf32, #tpu.memory_space<vmem>>, vector<1x128xf32>,
    %12 = arith.subf %7, %2 : vector<1x128xf32>
    %c2 = arith.constant 2 : index
    %c0_9 = arith.constant 0 : index
    %13 = vector.load %arg3[%c2, %c0_9] : memref<3x128xf32, #tpu.memory_space<vmem>>, vector<1x128xf32>
    tpu.vector_store %arg3[%c2, %c0_9], %12 {strides = array<i32>} : memref<3x128xf32, #tpu.memory_space<vmem>>, vector<1x128xf32>,
    return
  }
  func.func @transform_0(%arg0: i32) -> (i32, i32) {
    %c0_i32 = arith.constant 0 : i32
    %c0_i32_0 = arith.constant 0 : i32
    return %c0_i32, %arg0 : i32, i32
  }
  func.func @transform_1(%arg0: i32) -> (i32, i32) {
    %c0_i32 = arith.constant 0 : i32
    %c0_i32_0 = arith.constant 0 : i32
    return %c0_i32, %arg0 : i32, i32
  }
  func.func @transform_2(%arg0: i32) -> (i32, i32) {
    %c0_i32 = arith.constant 0 : i32
    %c0_i32_0 = arith.constant 0 : i32
    return %c0_i32, %arg0 : i32, i32
  }
}

</mosaic_0001>

<llo_original>
// kernel: tpu_custom_call.1
$region0: #{tpu_custom_call.1}
  #allocation0 [shape = 'u32[]', space=smem, size = 0x4, offset = 0x4, fixed_abs, tag = 'smem constant byte address 0x4 - core index']
  #allocation1 [shape = 'u32[144,128]{1,0:T(1,128)}', space=vmem, size = 0x12000, scoped, tag = 'internal scratch']
  %s0 = inlined_call_operand.hbm [shape: f32[3,128], index: 0, kind: input, shape index: {}]
  %s1 = inlined_call_operand.vmem [shape: f32[1,128], index: 1, kind: input, shape index: {}]
  %s2 = inlined_call_operand.hbm [shape: f32[3,128], index: 2, kind: output, shape index: {}]
  %s3 = sld [smem:[#allocation0]]
  $region22: #{tpu_custom_call.1} parent=0
    _
  %s5 = ssub.s32 1, %s3
  %s6 = scalar_select 0, %s5, %s3
  $region1: #{tpu_custom_call.1} parent=0
    #allocation2 [shape = 'u8[2048]{0}', space=vmem, size = 0x800, scoped, tag = 'input window, operand 0, single buffered']
    #allocation3 [shape = 's32[1]{0}', space=sflag, size = 0x4, scoped, tag = 'scoped memory for tpu_custom_call.1']
    #allocation4 [shape = 's32[1]{0}', space=sflag, size = 0x4, scoped, tag = 'scoped memory for tpu_custom_call.1']
    #allocation5 [shape = 'u8[2048]{0}', space=vmem, size = 0x800, scoped, tag = 'output window, operand 0, single buffered']
    %7 = vsyncpa [#allocation3], 0
    %8 = vsyncpa [#allocation4], 0
    // Predicated region
    $region2: #{tpu_custom_call.1} parent=1 // pred_check
      _
    $region3: #{tpu_custom_call.1} parent=1 // pred_check_branch
      %10 = sbr.rel (0) target = $region5
    $region4: #{tpu_custom_call.1} parent=1 // pred_region
      %s12 = ssub.s32 64, 64
      %13 = vsyncadd [#allocation3], %s12
      %s15 = sshll.u32 [#allocation2], 4
      %s16 = int_to_ptr.vmem [resolvable:$true] %s15
      %18 = dma.hbm_to_vmem [thread:$0]  %s0, 64, %s16, [#allocation3]
    $region5: #{tpu_custom_call.1} parent=1 // pred_fallthru
      _
    // Predicated region
    $region6: #{tpu_custom_call.1} parent=1 // pred_check
      _
    $region7: #{tpu_custom_call.1} parent=1 // pred_check_branch
      %20 = sbr.rel (0) target = $region9
    $region8: #{tpu_custom_call.1} parent=1 // pred_region
      _
    $region9: #{tpu_custom_call.1} parent=1 // pred_fallthru
      _
    // Predicated region
    $region10: #{tpu_custom_call.1} parent=1 // pred_check
      _
    $region11: #{tpu_custom_call.1} parent=1 // pred_check_branch
      %22 = sbr.rel (0) target = $region13
    $region12: #{tpu_custom_call.1} parent=1 // pred_region
      %23 = dma.done [#allocation3], 64
    $region13: #{tpu_custom_call.1} parent=1 // pred_fallthru
      _
    %v24 = vld [vmem:[#allocation2] sm:$0x1]
    %v25 = vld [vmem:[#allocation2 + $0x1] sm:$0x1]
    %v26 = vld [vmem:[%s1] sm:$0x1]
    %v27 = vmul.f32 %v24, %v25
    %v28 = vmul.f32 %v27, 2.3
    %v29 = vsub.f32 %v26, %v28
    %30 = vst [vmem:[#allocation5] sm:$0x1] %v29
    %v31 = vsub.f32 %v28, %v25
    %32 = vst [vmem:[#allocation5 + $0x1] sm:$0x1] %v31
    %v33 = vsub.f32 %v25, %v26
    %34 = vst [vmem:[#allocation5 + $0x2] sm:$0x1] %v33
    // Predicated region
    $region14: #{tpu_custom_call.1} parent=1 // pred_check
      _
    $region15: #{tpu_custom_call.1} parent=1 // pred_check_branch
      %36 = sbr.rel (0) target = $region17
    $region16: #{tpu_custom_call.1} parent=1 // pred_region
      %s38 = ssub.s32 64, 64
      %39 = vsyncadd [#allocation4], %s38
      %s41 = sshll.u32 [#allocation5], 4
      %s42 = int_to_ptr.vmem [resolvable:$true] %s41
      %44 = dma.vmem_to_hbm [thread:$0]  %s42, 64, %s2, [#allocation4]
    $region17: #{tpu_custom_call.1} parent=1 // pred_fallthru
      _
    // Predicated region
    $region18: #{tpu_custom_call.1} parent=1 // pred_check
      _
    $region19: #{tpu_custom_call.1} parent=1 // pred_check_branch
      %46 = sbr.rel (0) target = $region21
    $region20: #{tpu_custom_call.1} parent=1 // pred_region
      %47 = dma.done [#allocation4], 64
    $region21: #{tpu_custom_call.1} parent=1 // pred_fallthru
      _
    %48 = vsyncpa [#allocation3], 1
    %49 = vsyncpa [#allocation4], 1

</llo_original>
